<compile_context>
chip_gen: v5e
topology: v5e:2x2
jax: 0.10.0
libtpu: 0.0.40
codegen_flags: <defaults>
</compile_context>

<pallas_src>
import numpy as np
import jax
import jax.numpy as jnp
from jax import lax
from jax.experimental import pallas as pl
from jax.experimental.pallas import tpu as pltpu

# ---- model hyper-parameters (small, consistent with the module) ----
B = 2          # batch
T = 8          # sequence length (<= block_size)
N_EMBD = 32    # n_embd
N_HEAD = 4     # n_head
HEAD_SIZE = N_EMBD // N_HEAD
HIDDEN = 4 * N_EMBD
LN_EPS = 1e-5

BT = B * T                    # 16 query rows
HBT = N_HEAD * B * T          # 64 replicated K/V rows == score columns (head-major)

# --- packed weight-slab column offsets (all matrices with C rows, lane-concat) ---
_QKV0, _QKV1 = 0, 3 * N_EMBD                     # [Wq|Wk|Wv]     cols   0: 96
_PROJ0, _PROJ1 = 3 * N_EMBD, 4 * N_EMBD          # Wproj          cols  96:128
_W10, _W11 = 4 * N_EMBD, 4 * N_EMBD + HIDDEN     # W1             cols 128:256
W_SLAB_COLS = 4 * N_EMBD + HIDDEN                # 256

# --- packed vector-slab rows (each padded to 128 lanes) ---
_LN1W, _LN1B, _BPROJ, _LN2W, _LN2B, _B2, _B1 = range(7)

# --- packed mask-slab rows ---
_BD0, _BD1 = 0, HBT                              # bd_kv        (64, :32)
_SS0, _SS1 = HBT, 2 * HBT                        # seg_sum      (64, 64)
_AM0, _AM1 = 2 * HBT, 2 * HBT + BT               # add_mask     (16, 64)
_DG0, _DG1 = 2 * HBT + BT, 2 * HBT + 2 * BT      # denom_guard  (16, 64)
MASK_SLAB_ROWS = 2 * HBT + 2 * BT                # 160


def _layernorm(x, w, b):
    mu = jnp.mean(x, axis=-1, keepdims=True)
    var = jnp.mean((x - mu) * (x - mu), axis=-1, keepdims=True)
    return (x - mu) * lax.rsqrt(var + LN_EPS) * w + b


def _block_kernel(x_ref, w_ref, w2_ref, vec_ref, mask_ref, o_ref):
    C, H = N_EMBD, N_HEAD
    x = x_ref[...]                                       # (BT, C) fp32

    # ---- static slices out of the packed slabs (no extra DMAs, no iota builds) ----
    wqkv  = w_ref[:, _QKV0:_QKV1]                        # (C, 3C)
    wproj = w_ref[:, _PROJ0:_PROJ1]                      # (C, C)
    w1    = w_ref[:, _W10:_W11]                          # (C, 4C)
    w2    = w2_ref[...]                                  # (4C, C)

    ln1w  = vec_ref[_LN1W:_LN1W + 1, :C]
    ln1b  = vec_ref[_LN1B:_LN1B + 1, :C]
    bproj = vec_ref[_BPROJ:_BPROJ + 1, :C]
    ln2w  = vec_ref[_LN2W:_LN2W + 1, :C]
    ln2b  = vec_ref[_LN2B:_LN2B + 1, :C]
    b2    = vec_ref[_B2:_B2 + 1, :C]
    b1    = vec_ref[_B1:_B1 + 1, :HIDDEN]

    bd_kv       = mask_ref[_BD0:_BD1, :C]                # (HBT, C)   0/1 head selector
    seg_sum     = mask_ref[_SS0:_SS1, :]                 # (HBT, HBT) 0/1 segment sums
    add_mask    = mask_ref[_AM0:_AM1, :]                 # (BT, HBT)  0 / -1e30
    denom_guard = mask_ref[_DG0:_DG1, :]                 # (BT, HBT)  1 on dead segments

    # ---------------- LayerNorm 1 + fused QKV projection ----------------
    h1 = _layernorm(x, ln1w, ln1b)                       # (BT, C)
    qkv = jnp.dot(h1, wqkv, preferred_element_type=jnp.float32)   # (BT, 3C)
    scale = C ** (-0.5)                                  # n_embd scale (matches reference)
    q = qkv[:, :C] * scale                               # fold scale into q
    k = qkv[:, C:2 * C]
    v = qkv[:, 2 * C:3 * C]

    # ------------- all (batch, head) attention in 3 MXU matmuls -------------
    # Head-major replicated K/V slabs, zeroed outside each head's columns:
    # row r = h*B*T + b*T + j of k_bd holds k[b*T + j, :] restricted to head h.
    k_bd = jnp.concatenate([k] * H, axis=0) * bd_kv      # (HBT, C)
    v_bd = jnp.concatenate([v] * H, axis=0) * bd_kv      # (HBT, C)

    # scores[i, h*B*T + b*T + j] = q_h[i] . k_h[b*T + j]  (contraction over C)
    scores = lax.dot_general(q, k_bd, (((1,), (1,)), ((), ())),
                             preferred_element_type=jnp.float32)  # (BT, HBT)
    scores = scores + add_mask                           # causal + cross-batch -> -1e30

    # Segmented softmax: a single per-row max is subtracted (cancels after the
    # per-segment normalisation; every live segment keeps its diagonal column),
    # per-(head, batch) denominators come from one matmul with the block-diagonal
    # seg_sum matrix; fully-masked cross-batch segments get denom 1 so 0/1 = 0.
    p = jnp.exp(scores - jnp.max(scores, axis=-1, keepdims=True))
    denom = jnp.dot(p, seg_sum, preferred_element_type=jnp.float32) + denom_guard
    wei = p / denom                                      # exact divide (review item)

    # A @ V lands directly in concatenated-head (BT, C) layout.
    att = jnp.dot(wei, v_bd, preferred_element_type=jnp.float32)            # (BT, C)
    sa = jnp.dot(att, wproj, preferred_element_type=jnp.float32) + bproj
    x1 = x + sa                                          # residual 1

    # ---------------- LayerNorm 2 + feed-forward ----------------
    h2 = _layernorm(x1, ln2w, ln2b)
    ff = jnp.maximum(jnp.dot(h2, w1, preferred_element_type=jnp.float32) + b1, 0.0)
    ff = jnp.dot(ff, w2, preferred_element_type=jnp.float32) + b2
    o_ref[...] = x1 + ff                                 # residual 2 (dropout = identity)


# ---------------- static masks (numpy, built once at pack time) ----------------
def _build_mask_slab():
    C, hs = N_EMBD, HEAD_SIZE

    r = np.arange(HBT)[:, None]
    d = np.arange(C)[None, :]
    bd_kv = ((r // BT) == (d // hs)).astype(np.float32)            # (HBT, C)

    c1 = np.arange(HBT)[:, None]
    c2 = np.arange(HBT)[None, :]
    seg_sum = ((c1 // T) == (c2 // T)).astype(np.float32)          # (HBT, HBT)

    i = np.arange(BT)[:, None]
    col = np.arange(HBT)[None, :]
    r2 = col % BT                                                  # b'*T + j
    same_batch = (i // T) == (r2 // T)
    causal = (r2 % T) <= (i % T)
    add_mask = np.where(same_batch & causal, 0.0, -1e30).astype(np.float32)
    denom_guard = (~same_batch).astype(np.float32)                 # 1 on all-masked segs

    slab = np.zeros((MASK_SLAB_ROWS, HBT), np.float32)
    slab[_BD0:_BD1, :C] = bd_kv
    slab[_SS0:_SS1, :] = seg_sum
    slab[_AM0:_AM1, :] = add_mask
    slab[_DG0:_DG1, :] = denom_guard
    return jnp.asarray(slab)


def pack_params(params):
    """One-time packing of the 12 parameter tensors into 4 DMA slabs."""
    w_slab = jnp.concatenate(
        [params["wq"], params["wk"], params["wv"], params["wproj"], params["w1"]],
        axis=1)                                                    # (32, 256)

    def pad128(v):
        return jnp.pad(v, ((0, 0), (0, 128 - v.shape[1])))

    vec_slab = jnp.concatenate(
        [pad128(params["ln1_w"]), pad128(params["ln1_b"]), pad128(params["bproj"]),
         pad128(params["ln2_w"]), pad128(params["ln2_b"]), pad128(params["b2"]),
         params["b1"], jnp.zeros((1, 128), jnp.float32)], axis=0)  # (8, 128)

    return {"w_slab": w_slab, "w2": params["w2"],
            "vec_slab": vec_slab, "mask_slab": _build_mask_slab()}


def transformer_block(x, packed):
    """x: (B, T, C) float32; packed: output of pack_params()."""
    Bv, Tv, Cv = x.shape
    assert (Bv, Tv, Cv) == (B, T, N_EMBD)
    x2d = x.reshape(BT, N_EMBD)

    full = lambda shp: pl.BlockSpec(shp, lambda i: tuple(0 for _ in shp))

    out2d = pl.pallas_call(
        _block_kernel,
        out_shape=jax.ShapeDtypeStruct((BT, N_EMBD), jnp.float32),
        grid_spec=pltpu.PrefetchScalarGridSpec(
            num_scalar_prefetch=0,
            grid=(1,),                              # whole slab, one step (latency-bound)
            in_specs=[
                full((BT, N_EMBD)),                 # x
                full((N_EMBD, W_SLAB_COLS)),        # [Wq|Wk|Wv|Wproj|W1]
                full((HIDDEN, N_EMBD)),             # W2
                full((8, 128)),                     # LN gains/biases + biases
                full((MASK_SLAB_ROWS, HBT)),        # static attention masks
            ],
            out_specs=full((BT, N_EMBD)),
        ),
        compiler_params=pltpu.CompilerParams(
            dimension_semantics=("arbitrary",)),
    )(x2d, packed["w_slab"], packed["w2"], packed["vec_slab"], packed["mask_slab"])

    return out2d.reshape(B, T, N_EMBD)


# ---------------- pure-JAX reference (for verification) ----------------
def reference_block(x, p):
    def ln(z, w, b):
        mu = jnp.mean(z, axis=-1, keepdims=True)
        var = jnp.mean((z - mu) ** 2, axis=-1, keepdims=True)
        return (z - mu) / jnp.sqrt(var + LN_EPS) * w + b

    h = ln(x, p["ln1_w"][0], p["ln1_b"][0])
    q = h @ p["wq"]; k = h @ p["wk"]; v = h @ p["wv"]          # (B,T,C)
    scale = N_EMBD ** (-0.5)
    mask = jnp.tril(jnp.ones((T, T), dtype=bool))
    outs = []
    for hd in range(N_HEAD):
        sl = slice(hd * HEAD_SIZE, (hd + 1) * HEAD_SIZE)
        wei = jnp.einsum("btd,bsd->bts", q[..., sl], k[..., sl]) * scale
        wei = jnp.where(mask, wei, -jnp.inf)
        wei = jax.nn.softmax(wei, axis=-1)
        outs.append(jnp.einsum("bts,bsd->btd", wei, v[..., sl]))
    att = jnp.concatenate(outs, axis=-1)
    x1 = x + att @ p["wproj"] + p["bproj"][0]
    h2 = ln(x1, p["ln2_w"][0], p["ln2_b"][0])
    ff = jnp.maximum(h2 @ p["w1"] + p["b1"][0], 0.0) @ p["w2"] + p["b2"][0]
    return x1 + ff


def init_params(key):
    ks = jax.random.split(key, 10)
    s = 0.02
    return {
        "ln1_w": jnp.ones((1, N_EMBD), jnp.float32),
        "ln1_b": jnp.zeros((1, N_EMBD), jnp.float32),
        "wq": s * jax.random.normal(ks[0], (N_EMBD, N_EMBD), jnp.float32),
        "wk": s * jax.random.normal(ks[1], (N_EMBD, N_EMBD), jnp.float32),
        "wv": s * jax.random.normal(ks[2], (N_EMBD, N_EMBD), jnp.float32),
        "wproj": s * jax.random.normal(ks[3], (N_EMBD, N_EMBD), jnp.float32),
        "bproj": s * jax.random.normal(ks[4], (1, N_EMBD), jnp.float32),
        "ln2_w": jnp.ones((1, N_EMBD), jnp.float32),
        "ln2_b": jnp.zeros((1, N_EMBD), jnp.float32),
        "w1": s * jax.random.normal(ks[5], (N_EMBD, HIDDEN), jnp.float32),
        "b1": s * jax.random.normal(ks[6], (1, HIDDEN), jnp.float32),
        "w2": s * jax.random.normal(ks[7], (HIDDEN, N_EMBD), jnp.float32),
        "b2": s * jax.random.normal(ks[8], (1, N_EMBD), jnp.float32),
    }


if __name__ == "__main__":
    key = jax.random.PRNGKey(0)
    kx, kp = jax.random.split(key)
    x = jax.random.normal(kx, (B, T, N_EMBD), jnp.float32)
    params = init_params(kp)
    packed = pack_params(params)          # one-time packing: 4 slabs (+x = 5 DMAs/call)

    out = jax.block_until_ready(transformer_block(x, packed))
    ref = jax.block_until_ready(reference_block(x, params))

    assert out.shape == (B, T, N_EMBD)
    # exact softmax divide now; tolerance covers XLA-vs-Mosaic f32 matmul rounding only
    assert jnp.allclose(out, ref, atol=2e-4, rtol=2e-4), "mismatch vs reference"
    print("KERNEL_OK")
</pallas_src>

<mosaic_0001>
module attributes {stable_mosaic.version = 11 : i64} {
  func.func @_block_kernel(%arg0: i32, %arg1: memref<16x32xf32, #tpu.memory_space<vmem>>, %arg2: memref<32x256xf32, #tpu.memory_space<vmem>>, %arg3: memref<128x32xf32, #tpu.memory_space<vmem>>, %arg4: memref<8x128xf32, #tpu.memory_space<vmem>>, %arg5: memref<160x64xf32, #tpu.memory_space<vmem>>, %arg6: memref<16x32xf32, #tpu.memory_space<vmem>>) attributes {dimension_semantics = [#tpu.dimension_semantics<arbitrary>], iteration_bounds = array<i64: 1>, scalar_prefetch = 0 : i64, scratch_operands = 0 : i64, tpu.core_type = #tpu.core_type<tc>, window_params = [{pipeline_mode = #tpu.pipeline_mode<synchronous>, transform_indices = @transform_0, window_bounds = array<i64: 16, 32>}, {pipeline_mode = #tpu.pipeline_mode<synchronous>, transform_indices = @transform_1, window_bounds = array<i64: 32, 256>}, {pipeline_mode = #tpu.pipeline_mode<synchronous>, transform_indices = @transform_2, window_bounds = array<i64: 128, 32>}, {pipeline_mode = #tpu.pipeline_mode<synchronous>, transform_indices = @transform_3, window_bounds = array<i64: 8, 128>}, {pipeline_mode = #tpu.pipeline_mode<synchronous>, transform_indices = @transform_4, window_bounds = array<i64: 160, 64>}, {pipeline_mode = #tpu.pipeline_mode<synchronous>, transform_indices = @transform_5, window_bounds = array<i64: 16, 32>}]} {
    %c0 = arith.constant 0 : index
    %c0_0 = arith.constant 0 : index
    %0 = vector.load %arg1[%c0, %c0_0] : memref<16x32xf32, #tpu.memory_space<vmem>>, vector<16x32xf32>
    %c0_1 = arith.constant 0 : index
    %c0_2 = arith.constant 0 : index
    %1 = vector.load %arg2[%c0_1, %c0_2] : memref<32x256xf32, #tpu.memory_space<vmem>>, vector<32x96xf32>
    %c0_3 = arith.constant 0 : index
    %c96 = arith.constant 96 : index
    %2 = vector.load %arg2[%c0_3, %c96] : memref<32x256xf32, #tpu.memory_space<vmem>>, vector<32x32xf32>
    %c0_4 = arith.constant 0 : index
    %c128 = arith.constant 128 : index
    %3 = vector.load %arg2[%c0_4, %c128] : memref<32x256xf32, #tpu.memory_space<vmem>>, vector<32x128xf32>
    %c0_5 = arith.constant 0 : index
    %c0_6 = arith.constant 0 : index
    %4 = vector.load %arg3[%c0_5, %c0_6] : memref<128x32xf32, #tpu.memory_space<vmem>>, vector<128x32xf32>
    %c0_7 = arith.constant 0 : index
    %c0_8 = arith.constant 0 : index
    %5 = vector.load %arg4[%c0_7, %c0_8] : memref<8x128xf32, #tpu.memory_space<vmem>>, vector<1x32xf32>
    %c1 = arith.constant 1 : index
    %c0_9 = arith.constant 0 : index
    %6 = vector.load %arg4[%c1, %c0_9] : memref<8x128xf32, #tpu.memory_space<vmem>>, vector<1x32xf32>
    %c2 = arith.constant 2 : index
    %c0_10 = arith.constant 0 : index
    %7 = vector.load %arg4[%c2, %c0_10] : memref<8x128xf32, #tpu.memory_space<vmem>>, vector<1x32xf32>
    %c3 = arith.constant 3 : index
    %c0_11 = arith.constant 0 : index
    %8 = vector.load %arg4[%c3, %c0_11] : memref<8x128xf32, #tpu.memory_space<vmem>>, vector<1x32xf32>
    %c4 = arith.constant 4 : index
    %c0_12 = arith.constant 0 : index
    %9 = vector.load %arg4[%c4, %c0_12] : memref<8x128xf32, #tpu.memory_space<vmem>>, vector<1x32xf32>
    %c5 = arith.constant 5 : index
    %c0_13 = arith.constant 0 : index
    %10 = vector.load %arg4[%c5, %c0_13] : memref<8x128xf32, #tpu.memory_space<vmem>>, vector<1x32xf32>
    %c6 = arith.constant 6 : index
    %c0_14 = arith.constant 0 : index
    %11 = vector.load %arg4[%c6, %c0_14] : memref<8x128xf32, #tpu.memory_space<vmem>>, vector<1x128xf32>
    %c0_15 = arith.constant 0 : index
    %c0_16 = arith.constant 0 : index
    %12 = vector.load %arg5[%c0_15, %c0_16] : memref<160x64xf32, #tpu.memory_space<vmem>>, vector<64x32xf32>
    %c64 = arith.constant 64 : index
    %c0_17 = arith.constant 0 : index
    %13 = vector.load %arg5[%c64, %c0_17] : memref<160x64xf32, #tpu.memory_space<vmem>>, vector<64x64xf32>
    %c128_18 = arith.constant 128 : index
    %c0_19 = arith.constant 0 : index
    %14 = vector.load %arg5[%c128_18, %c0_19] : memref<160x64xf32, #tpu.memory_space<vmem>>, vector<16x64xf32>
    %c144 = arith.constant 144 : index
    %c0_20 = arith.constant 0 : index
    %15 = vector.load %arg5[%c144, %c0_20] : memref<160x64xf32, #tpu.memory_space<vmem>>, vector<16x64xf32>
    %cst = arith.constant dense<0.000000e+00> : vector<16xf32>
    %16 = vector.multi_reduction <add>, %0, %cst [1] : vector<16x32xf32> to vector<16xf32>
    %17 = vector.shape_cast %16 : vector<16xf32> to vector<16x1xf32>
    %cst_21 = arith.constant 3.200000e+01 : f32
    %18 = vector.broadcast %cst_21 : f32 to vector<16x1xf32>
    %19 = arith.divf %17, %18 : vector<16x1xf32>
    %20 = vector.broadcast %19 : vector<16x1xf32> to vector<16x32xf32>
    %21 = arith.subf %0, %20 : vector<16x32xf32>
    %22 = vector.broadcast %19 : vector<16x1xf32> to vector<16x32xf32>
    %23 = arith.subf %0, %22 : vector<16x32xf32>
    %24 = arith.mulf %21, %23 : vector<16x32xf32>
    %cst_22 = arith.constant dense<0.000000e+00> : vector<16xf32>
    %25 = vector.multi_reduction <add>, %24, %cst_22 [1] : vector<16x32xf32> to vector<16xf32>
    %26 = vector.shape_cast %25 : vector<16xf32> to vector<16x1xf32>
    %cst_23 = arith.constant 3.200000e+01 : f32
    %27 = vector.broadcast %cst_23 : f32 to vector<16x1xf32>
    %28 = arith.divf %26, %27 : vector<16x1xf32>
    %29 = vector.broadcast %19 : vector<16x1xf32> to vector<16x32xf32>
    %30 = arith.subf %0, %29 : vector<16x32xf32>
    %cst_24 = arith.constant 9.99999974E-6 : f32
    %31 = vector.broadcast %cst_24 : f32 to vector<16x1xf32>
    %32 = arith.addf %28, %31 : vector<16x1xf32>
    %33 = math.rsqrt %32 : vector<16x1xf32>
    %34 = vector.broadcast %33 : vector<16x1xf32> to vector<16x32xf32>
    %35 = arith.mulf %30, %34 : vector<16x32xf32>
    %36 = vector.broadcast %5 : vector<1x32xf32> to vector<16x32xf32>
    %37 = arith.mulf %35, %36 : vector<16x32xf32>
    %38 = vector.broadcast %6 : vector<1x32xf32> to vector<16x32xf32>
    %39 = arith.addf %37, %38 : vector<16x32xf32>
    %cst_25 = arith.constant dense<0.000000e+00> : vector<16x96xf32>
    %40 = tpu.matmul %39, %1, %cst_25 {dimension_numbers = #tpu.dot_dimension_numbers<[1], [0], [0], [1], [0, 0, 1, 1], [], []>} : vector<16x32xf32>, vector<32x96xf32>, vector<16x96xf32> -> vector<16x96xf32>
    %41 = vector.extract_strided_slice %40 {offsets = [0, 0], sizes = [16, 32], strides = [1, 1]} : vector<16x96xf32> to vector<16x32xf32>
    %cst_26 = arith.constant 0.176776692 : f32
    %42 = vector.broadcast %cst_26 : f32 to vector<16x32xf32>
    %43 = arith.mulf %41, %42 : vector<16x32xf32>
    %44 = vector.extract_strided_slice %40 {offsets = [0, 32], sizes = [16, 32], strides = [1, 1]} : vector<16x96xf32> to vector<16x32xf32>
    %45 = vector.extract_strided_slice %40 {offsets = [0, 64], sizes = [16, 32], strides = [1, 1]} : vector<16x96xf32> to vector<16x32xf32>
    %46 = tpu.concatenate %44, %44, %44, %44 in 0 : vector<16x32xf32>, vector<16x32xf32>, vector<16x32xf32>, vector<16x32xf32> -> vector<64x32xf32>
    %47 = arith.mulf %46, %12 : vector<64x32xf32>
    %48 = tpu.concatenate %45, %45, %45, %45 in 0 : vector<16x32xf32>, vector<16x32xf32>, vector<16x32xf32>, vector<16x32xf32> -> vector<64x32xf32>
    %49 = arith.mulf %48, %12 : vector<64x32xf32>
    %cst_27 = arith.constant dense<0.000000e+00> : vector<16x64xf32>
    %50 = tpu.matmul %43, %47, %cst_27 {dimension_numbers = #tpu.dot_dimension_numbers<[1], [1], [0], [0], [0, 0, 1, 0], [], []>} : vector<16x32xf32>, vector<64x32xf32>, vector<16x64xf32> -> vector<16x64xf32>
    %51 = arith.addf %50, %14 : vector<16x64xf32>
    %cst_28 = arith.constant dense<0xFF800000> : vector<16xf32>
    %52 = vector.multi_reduction <maximumf>, %51, %cst_28 [1] : vector<16x64xf32> to vector<16xf32>
    %53 = vector.shape_cast %52 : vector<16xf32> to vector<16x1xf32>
    %54 = vector.broadcast %53 : vector<16x1xf32> to vector<16x64xf32>
    %55 = arith.subf %51, %54 : vector<16x64xf32>
    %56 = math.exp %55 : vector<16x64xf32>
    %cst_29 = arith.constant dense<0.000000e+00> : vector<16x64xf32>
    %57 = tpu.matmul %56, %13, %cst_29 {dimension_numbers = #tpu.dot_dimension_numbers<[1], [0], [0], [1], [0, 0, 1, 1], [], []>} : vector<16x64xf32>, vector<64x64xf32>, vector<16x64xf32> -> vector<16x64xf32>
    %58 = arith.addf %57, %15 : vector<16x64xf32>
    %59 = arith.divf %56, %58 : vector<16x64xf32>
    %cst_30 = arith.constant dense<0.000000e+00> : vector<16x32xf32>
    %60 = tpu.matmul %59, %49, %cst_30 {dimension_numbers = #tpu.dot_dimension_numbers<[1], [0], [0], [1], [0, 0, 1, 1], [], []>} : vector<16x64xf32>, vector<64x32xf32>, vector<16x32xf32> -> vector<16x32xf32>
    %cst_31 = arith.constant dense<0.000000e+00> : vector<16x32xf32>
    %61 = tpu.matmul %60, %2, %cst_31 {dimension_numbers = #tpu.dot_dimension_numbers<[1], [0], [0], [1], [0, 0, 1, 1], [], []>} : vector<16x32xf32>, vector<32x32xf32>, vector<16x32xf32> -> vector<16x32xf32>
    %62 = vector.broadcast %7 : vector<1x32xf32> to vector<16x32xf32>
    %63 = arith.addf %61, %62 : vector<16x32xf32>
    %64 = arith.addf %0, %63 : vector<16x32xf32>
    %cst_32 = arith.constant dense<0.000000e+00> : vector<16xf32>
    %65 = vector.multi_reduction <add>, %64, %cst_32 [1] : vector<16x32xf32> to vector<16xf32>
    %66 = vector.shape_cast %65 : vector<16xf32> to vector<16x1xf32>
    %cst_33 = arith.constant 3.200000e+01 : f32
    %67 = vector.broadcast %cst_33 : f32 to vector<16x1xf32>
    %68 = arith.divf %66, %67 : vector<16x1xf32>
    %69 = vector.broadcast %68 : vector<16x1xf32> to vector<16x32xf32>
    %70 = arith.subf %64, %69 : vector<16x32xf32>
    %71 = vector.broadcast %68 : vector<16x1xf32> to vector<16x32xf32>
    %72 = arith.subf %64, %71 : vector<16x32xf32>
    %73 = arith.mulf %70, %72 : vector<16x32xf32>
    %cst_34 = arith.constant dense<0.000000e+00> : vector<16xf32>
    %74 = vector.multi_reduction <add>, %73, %cst_34 [1] : vector<16x32xf32> to vector<16xf32>
    %75 = vector.shape_cast %74 : vector<16xf32> to vector<16x1xf32>
    %cst_35 = arith.constant 3.200000e+01 : f32
    %76 = vector.broadcast %cst_35 : f32 to vector<16x1xf32>
    %77 = arith.divf %75, %76 : vector<16x1xf32>
    %78 = vector.broadcast %68 : vector<16x1xf32> to vector<16x32xf32>
    %79 = arith.subf %64, %78 : vector<16x32xf32>
    %cst_36 = arith.constant 9.99999974E-6 : f32
    %80 = vector.broadcast %cst_36 : f32 to vector<16x1xf32>
    %81 = arith.addf %77, %80 : vector<16x1xf32>
    %82 = math.rsqrt %81 : vector<16x1xf32>
    %83 = vector.broadcast %82 : vector<16x1xf32> to vector<16x32xf32>
    %84 = arith.mulf %79, %83 : vector<16x32xf32>
    %85 = vector.broadcast %8 : vector<1x32xf32> to vector<16x32xf32>
    %86 = arith.mulf %84, %85 : vector<16x32xf32>
    %87 = vector.broadcast %9 : vector<1x32xf32> to vector<16x32xf32>
    %88 = arith.addf %86, %87 : vector<16x32xf32>
    %cst_37 = arith.constant dense<0.000000e+00> : vector<16x128xf32>
    %89 = tpu.matmul %88, %3, %cst_37 {dimension_numbers = #tpu.dot_dimension_numbers<[1], [0], [0], [1], [0, 0, 1, 1], [], []>} : vector<16x32xf32>, vector<32x128xf32>, vector<16x128xf32> -> vector<16x128xf32>
    %90 = vector.broadcast %11 : vector<1x128xf32> to vector<16x128xf32>
    %91 = arith.addf %89, %90 : vector<16x128xf32>
    %cst_38 = arith.constant 0.000000e+00 : f32
    %92 = vector.broadcast %cst_38 : f32 to vector<16x128xf32>
    %93 = arith.maximumf %91, %92 : vector<16x128xf32>
    %cst_39 = arith.constant dense<0.000000e+00> : vector<16x32xf32>
    %94 = tpu.matmul %93, %4, %cst_39 {dimension_numbers = #tpu.dot_dimension_numbers<[1], [0], [0], [1], [0, 0, 1, 1], [], []>} : vector<16x128xf32>, vector<128x32xf32>, vector<16x32xf32> -> vector<16x32xf32>
    %95 = vector.broadcast %10 : vector<1x32xf32> to vector<16x32xf32>
    %96 = arith.addf %94, %95 : vector<16x32xf32>
    %97 = arith.addf %64, %96 : vector<16x32xf32>
    %c0_40 = arith.constant 0 : index
    %c0_41 = arith.constant 0 : index
    %98 = vector.load %arg6[%c0_40, %c0_41] : memref<16x32xf32, #tpu.memory_space<vmem>>, vector<16x32xf32>
    tpu.vector_store %arg6[%c0_40, %c0_41], %97 {strides = array<i32>} : memref<16x32xf32, #tpu.memory_space<vmem>>, vector<16x32xf32>,
    return
  }
  func.func @transform_0(%arg0: i32) -> (i32, i32) {
    %c0_i32 = arith.constant 0 : i32
    %c0_i32_0 = arith.constant 0 : i32
    %c0_i32_1 = arith.constant 0 : i32
    return %c0_i32, %c0_i32_0 : i32, i32
  }
  func.func @transform_1(%arg0: i32) -> (i32, i32) {
    %c0_i32 = arith.constant 0 : i32
    %c0_i32_0 = arith.constant 0 : i32
    %c0_i32_1 = arith.constant 0 : i32
    return %c0_i32, %c0_i32_0 : i32, i32
  }
  func.func @transform_2(%arg0: i32) -> (i32, i32) {
    %c0_i32 = arith.constant 0 : i32
    %c0_i32_0 = arith.constant 0 : i32
    %c0_i32_1 = arith.constant 0 : i32
    return %c0_i32, %c0_i32_0 : i32, i32
  }
  func.func @transform_3(%arg0: i32) -> (i32, i32) {
    %c0_i32 = arith.constant 0 : i32
    %c0_i32_0 = arith.constant 0 : i32
    %c0_i32_1 = arith.constant 0 : i32
    return %c0_i32, %c0_i32_0 : i32, i32
  }
  func.func @transform_4(%arg0: i32) -> (i32, i32) {
    %c0_i32 = arith.constant 0 : i32
    %c0_i32_0 = arith.constant 0 : i32
    %c0_i32_1 = arith.constant 0 : i32
    return %c0_i32, %c0_i32_0 : i32, i32
  }
  func.func @transform_5(%arg0: i32) -> (i32, i32) {
    %c0_i32 = arith.constant 0 : i32
    %c0_i32_0 = arith.constant 0 : i32
    %c0_i32_1 = arith.constant 0 : i32
    return %c0_i32, %c0_i32_0 : i32, i32
  }
}

</mosaic_0001>

<llo_original>
// kernel: tpu_custom_call.1
$region0: #{tpu_custom_call.1}
  #allocation0 [shape = 'u32[]', space=smem, size = 0x4, offset = 0x4, fixed_abs, tag = 'smem constant byte address 0x4 - core index']
  #allocation1 [shape = 'u32[72,128]{1,0:T(1,128)}', space=vmem, size = 0x9000, scoped, tag = 'internal scratch']
  %s0 = inlined_call_operand.vmem [shape: f32[16,32], index: 0, kind: input, shape index: {}]
  %s1 = inlined_call_operand.vmem [shape: f32[32,256], index: 1, kind: input, shape index: {}]
  %s2 = inlined_call_operand.vmem [shape: f32[128,32], index: 2, kind: input, shape index: {}]
  %s3 = inlined_call_operand.vmem [shape: f32[8,128], index: 3, kind: input, shape index: {}]
  %s4 = inlined_call_operand.vmem [shape: f32[160,64], index: 4, kind: input, shape index: {}]
  %s5 = inlined_call_operand.hbm [shape: f32[16,32], index: 5, kind: output, shape index: {}]
  %s6 = sld [smem:[#allocation0]]
  $region30: #{tpu_custom_call.1} parent=0
    _
  %s8 = ssub.s32 1, %s6
  %s9 = scalar_select 0, %s8, %s6
  $region1: #{tpu_custom_call.1} parent=0
    #allocation2 [shape = 'u8[8192]{0}', space=vmem, size = 0x2000, scoped, tag = 'output window, operand 0, single buffered']
    #allocation3 [shape = 's32[1]{0}', space=sflag, size = 0x4, scoped, tag = 'scoped memory for tpu_custom_call.1']
    %10 = vsyncpa [#allocation3], 0
    // Predicated region
    $region2: #{tpu_custom_call.1} parent=1 // pred_check
      _
    $region3: #{tpu_custom_call.1} parent=1 // pred_check_branch
      %12 = sbr.rel (0) target = $region5
    $region4: #{tpu_custom_call.1} parent=1 // pred_region
      _
    $region5: #{tpu_custom_call.1} parent=1 // pred_fallthru
      _
    // Predicated region
    $region6: #{tpu_custom_call.1} parent=1 // pred_check
      _
    $region7: #{tpu_custom_call.1} parent=1 // pred_check_branch
      %14 = sbr.rel (0) target = $region9
    $region8: #{tpu_custom_call.1} parent=1 // pred_region
      _
    $region9: #{tpu_custom_call.1} parent=1 // pred_fallthru
      _
    // Predicated region
    $region10: #{tpu_custom_call.1} parent=1 // pred_check
      _
    $region11: #{tpu_custom_call.1} parent=1 // pred_check_branch
      %16 = sbr.rel (0) target = $region13
    $region12: #{tpu_custom_call.1} parent=1 // pred_region
      _
    $region13: #{tpu_custom_call.1} parent=1 // pred_fallthru
      _
    // Predicated region
    $region14: #{tpu_custom_call.1} parent=1 // pred_check
      _
    $region15: #{tpu_custom_call.1} parent=1 // pred_check_branch
      %18 = sbr.rel (0) target = $region17
    $region16: #{tpu_custom_call.1} parent=1 // pred_region
      _
    $region17: #{tpu_custom_call.1} parent=1 // pred_fallthru
      _
    // Predicated region
    $region18: #{tpu_custom_call.1} parent=1 // pred_check
      _
    $region19: #{tpu_custom_call.1} parent=1 // pred_check_branch
      %20 = sbr.rel (0) target = $region21
    $region20: #{tpu_custom_call.1} parent=1 // pred_region
      _
    $region21: #{tpu_custom_call.1} parent=1 // pred_fallthru
      _
    %v21 = vld [vmem:[%s0] sm:$0xff]
    %v22 = vld [vmem:[%s0 + $0x8] sm:$0xff]
    %v23 = vld [vmem:[%s1] sm:$0xff]
    %v24 = vld [vmem:[%s1 + $0x10] sm:$0xff]
    %v25 = vld [vmem:[%s1 + $0x20] sm:$0xff]
    %v26 = vld [vmem:[%s1 + $0x30] sm:$0xff]
    %v27 = vld [vmem:[%s1 + $0x8] sm:$0xff]
    %v28 = vld [vmem:[%s1 + $0x18] sm:$0xff]
    %v29 = vld [vmem:[%s1 + $0x28] sm:$0xff]
    %v30 = vld [vmem:[%s1 + $0x38] sm:$0xff]
    %v31 = vld [vmem:[%s2] sm:$0xff]
    %v32 = vld [vmem:[%s2 + $0x8] sm:$0xff]
    %v33 = vld [vmem:[%s2 + $0x10] sm:$0xff]
    %v34 = vld [vmem:[%s2 + $0x18] sm:$0xff]
    %v35 = vld [vmem:[%s2 + $0x20] sm:$0xff]
    %v36 = vld [vmem:[%s2 + $0x28] sm:$0xff]
    %v37 = vld [vmem:[%s2 + $0x30] sm:$0xff]
    %v38 = vld [vmem:[%s2 + $0x38] sm:$0xff]
    %v39 = vld [vmem:[%s2 + $0x40] sm:$0xff]
    %v40 = vld [vmem:[%s2 + $0x48] sm:$0xff]
    %v41 = vld [vmem:[%s2 + $0x50] sm:$0xff]
    %v42 = vld [vmem:[%s2 + $0x58] sm:$0xff]
    %v43 = vld [vmem:[%s2 + $0x60] sm:$0xff]
    %v44 = vld [vmem:[%s2 + $0x68] sm:$0xff]
    %v45 = vld [vmem:[%s2 + $0x70] sm:$0xff]
    %v46 = vld [vmem:[%s2 + $0x78] sm:$0xff]
    %v47 = vld [vmem:[%s3] sm:$0x1]
    %v48 = vld [vmem:[%s3 + $0x1] sm:$0x1]
    %v49 = vld [vmem:[%s3 + $0x2] sm:$0x1]
    %v50 = vld [vmem:[%s3 + $0x3] sm:$0x1]
    %v51 = vld [vmem:[%s3 + $0x4] sm:$0x1]
    %v52 = vld [vmem:[%s3 + $0x5] sm:$0x1]
    %v53 = vld [vmem:[%s3 + $0x6] sm:$0x1]
    %v54 = vld [vmem:[%s4] sm:$0xff]
    %v55 = vld [vmem:[%s4 + $0x8] sm:$0xff]
    %v56 = vld [vmem:[%s4 + $0x10] sm:$0xff]
    %v57 = vld [vmem:[%s4 + $0x18] sm:$0xff]
    %v58 = vld [vmem:[%s4 + $0x20] sm:$0xff]
    %v59 = vld [vmem:[%s4 + $0x28] sm:$0xff]
    %v60 = vld [vmem:[%s4 + $0x30] sm:$0xff]
    %v61 = vld [vmem:[%s4 + $0x38] sm:$0xff]
    %v62 = vld [vmem:[%s4 + $0x40] sm:$0xff]
    %v63 = vld [vmem:[%s4 + $0x48] sm:$0xff]
    %v64 = vld [vmem:[%s4 + $0x50] sm:$0xff]
    %v65 = vld [vmem:[%s4 + $0x58] sm:$0xff]
    %v66 = vld [vmem:[%s4 + $0x60] sm:$0xff]
    %v67 = vld [vmem:[%s4 + $0x68] sm:$0xff]
    %v68 = vld [vmem:[%s4 + $0x70] sm:$0xff]
    %v69 = vld [vmem:[%s4 + $0x78] sm:$0xff]
    %v70 = vld [vmem:[%s4 + $0x80] sm:$0xff]
    %v71 = vld [vmem:[%s4 + $0x88] sm:$0xff]
    %v72 = vld [vmem:[%s4 + $0x90] sm:$0xff]
    %v73 = vld [vmem:[%s4 + $0x98] sm:$0xff]
    %vm74 = vcmask 261120
    %v75 = vsel %vm74, %v21, 0.0
    %76 = vadd.xlane.f32.xlu0 %v75
    %v77 = vpop.xlane.xlu0 %76
    %v78 = vsel %vm74, %v22, 0.0
    %79 = vadd.xlane.f32.xlu0 %v78
    %v80 = vpop.xlane.xlu0 %79
    %v81 = vrcp.pop 32.0
    %v82 = vmul.f32 32.0, %v81
    %v83 = vsub.f32 1.0, %v82
    %v84 = vmul.f32 %v81, %v83
    %v85 = vadd.f32 %v81, %v84
    %vm86 = vweird.f32 %v81
    %v87 = vsel %vm86, %v81, %v85
    %v88 = vmul.f32 %v77, %v87
    %v89 = vmul.f32 %v80, %v87
    %v90 = vsub.f32 %v21, %v88
    %v91 = vsub.f32 %v22, %v89
    %v92 = vmul.f32 %v90, %v90
    %v93 = vmul.f32 %v91, %v91
    %v94 = vsel %vm74, %v92, 0.0
    %95 = vadd.xlane.f32.xlu0 %v94
    %v96 = vpop.xlane.xlu0 %95
    %v97 = vsel %vm74, %v93, 0.0
    %98 = vadd.xlane.f32.xlu0 %v97
    %v99 = vpop.xlane.xlu0 %98
    %v100 = vmul.f32 %v96, %v87
    %v101 = vmul.f32 %v99, %v87
    %v102 = vadd.f32 %v100, 1e-05
    %v103 = vadd.f32 %v101, 1e-05
    %v104 = vrsqrt.pop %v102
    %v105 = vmul.f32 %v104, %v102
    %v106 = vmul.f32 %v105, %v104
    %v107 = vmul.f32 0.5, %v106
    %v108 = vsub.f32 1.5, %v107
    %v109 = vmul.f32 %v104, %v108
    %vm110 = vweird.f32 %v102
    %vm111 = vweird.f32 %v104
    %vm112 = vmor %vm110, %vm111
    %v113 = vsel %vm112, %v104, %v109
    %v114 = vrsqrt.pop %v103
    %v115 = vmul.f32 %v114, %v103
    %v116 = vmul.f32 %v115, %v114
    %v117 = vmul.f32 0.5, %v116
    %v118 = vsub.f32 1.5, %v117
    %v119 = vmul.f32 %v114, %v118
    %vm120 = vweird.f32 %v103
    %vm121 = vweird.f32 %v114
    %vm122 = vmor %vm120, %vm121
    %v123 = vsel %vm122, %v114, %v119
    %v124 = vmul.f32 %v90, %v113
    %v125 = vmul.f32 %v91, %v123
    %v126 = vperm.slane %v47, 0
    %v127 = vmul.f32 %v124, %v126
    %v128 = vmul.f32 %v125, %v126
    %v129 = vperm.slane %v48, 0
    %v130 = vadd.f32 %v127, %v129
    %v131 = vadd.f32 %v128, %v129
    %v133 = vsel %vm74, %v130, 0
    %v136 = vsel %vm74, %v131, 0
    %138 = vmatpush.msra.mxu0 0.0
    %139 = vmatpush.msra.mxu0 0.0
    %140 = vmatpush.msra.mxu0 0.0
    %141 = vmatpush.msra.mxu0 0.0
    %142 = vmatpush.msra.mxu0 0.0
    %143 = vmatpush.msra.mxu0 0.0
    %144 = vmatpush.msra.mxu0 0.0
    %145 = vmatpush.msra.mxu0 0.0
    %146 = vmatpush.msra.mxu0 0.0
    %147 = vmatpush.msra.mxu0 0.0
    %148 = vmatpush.msra.mxu0 0.0
    %149 = vmatpush.msra.mxu0 0.0
    %150 = vmatpush.msra.mxu0 %v26
    %151 = vmatpush.msra.mxu0 %v25
    %152 = vmatpush.msra.mxu0 %v24
    %153 = vmatpush.msra.mxu0 %v23
    %154 = vmatmul.f32.gmra.mxu0 %v133
    %v155 = vpop.f32.mrf.mxu0
    %v156 = vadd.f32 0.0, %v155
    %157 = vmatmul.f32.gmra.mxu0 %v136
    %v158 = vpop.f32.mrf.mxu0
    %v159 = vadd.f32 0.0, %v158
    %160 = vdwg.mxu0
    %v161 = vmul.f32 %v156, 0.17677669
    %v162 = vmul.f32 %v159, 0.17677669
    %171 = vrot.lane.b32.xlu0 %v54, 32
    %v172 = vpop.permute.xlu0 %171
    %173 = vrot.lane.b32.xlu0 %v55, 32
    %v174 = vpop.permute.xlu0 %173
    %175 = vrot.lane.b32.xlu0 %v56, 32
    %v176 = vpop.permute.xlu0 %175
    %177 = vrot.lane.b32.xlu0 %v57, 32
    %v178 = vpop.permute.xlu0 %177
    %179 = vrot.lane.b32.xlu0 %v58, 32
    %v180 = vpop.permute.xlu0 %179
    %181 = vrot.lane.b32.xlu0 %v59, 32
    %v182 = vpop.permute.xlu0 %181
    %183 = vrot.lane.b32.xlu0 %v60, 32
    %v184 = vpop.permute.xlu0 %183
    %185 = vrot.lane.b32.xlu0 %v61, 32
    %v186 = vpop.permute.xlu0 %185
    %v195 = vmul.f32 %v156, %v172
    %v196 = vmul.f32 %v159, %v174
    %v197 = vmul.f32 %v156, %v176
    %v198 = vmul.f32 %v159, %v178
    %v199 = vmul.f32 %v156, %v180
    %v200 = vmul.f32 %v159, %v182
    %v201 = vmul.f32 %v156, %v184
    %v202 = vmul.f32 %v159, %v186
    %203 = vrot.lane.b32.xlu0 %v54, 64
    %v204 = vpop.permute.xlu0 %203
    %205 = vrot.lane.b32.xlu0 %v55, 64
    %v206 = vpop.permute.xlu0 %205
    %207 = vrot.lane.b32.xlu0 %v56, 64
    %v208 = vpop.permute.xlu0 %207
    %209 = vrot.lane.b32.xlu0 %v57, 64
    %v210 = vpop.permute.xlu0 %209
    %211 = vrot.lane.b32.xlu0 %v58, 64
    %v212 = vpop.permute.xlu0 %211
    %213 = vrot.lane.b32.xlu0 %v59, 64
    %v214 = vpop.permute.xlu0 %213
    %215 = vrot.lane.b32.xlu0 %v60, 64
    %v216 = vpop.permute.xlu0 %215
    %217 = vrot.lane.b32.xlu0 %v61, 64
    %v218 = vpop.permute.xlu0 %217
    %v227 = vmul.f32 %v156, %v204
    %v228 = vmul.f32 %v159, %v206
    %v229 = vmul.f32 %v156, %v208
    %v230 = vmul.f32 %v159, %v210
    %v231 = vmul.f32 %v156, %v212
    %v232 = vmul.f32 %v159, %v214
    %v233 = vmul.f32 %v156, %v216
    %v234 = vmul.f32 %v159, %v218
    %243 = vrot.lane.b32.xlu0 %v195, 96
    %v244 = vpop.permute.xlu0 %243
    %245 = vrot.lane.b32.xlu0 %v196, 96
    %v246 = vpop.permute.xlu0 %245
    %247 = vrot.lane.b32.xlu0 %v197, 96
    %v248 = vpop.permute.xlu0 %247
    %249 = vrot.lane.b32.xlu0 %v198, 96
    %v250 = vpop.permute.xlu0 %249
    %251 = vrot.lane.b32.xlu0 %v199, 96
    %v252 = vpop.permute.xlu0 %251
    %253 = vrot.lane.b32.xlu0 %v200, 96
    %v254 = vpop.permute.xlu0 %253
    %255 = vrot.lane.b32.xlu0 %v201, 96
    %v256 = vpop.permute.xlu0 %255
    %257 = vrot.lane.b32.xlu0 %v202, 96
    %v258 = vpop.permute.xlu0 %257
    %v260 = vsel %vm74, %v161, 0
    %v263 = vsel %vm74, %v162, 0
    %v265 = vsel %vm74, %v244, 0
    %v267 = vsel %vm74, %v246, 0
    %v269 = vsel %vm74, %v248, 0
    %v271 = vsel %vm74, %v250, 0
    %v273 = vsel %vm74, %v252, 0
    %v275 = vsel %vm74, %v254, 0
    %v277 = vsel %vm74, %v256, 0
    %v279 = vsel %vm74, %v258, 0
    %281 = vmatpush.xpose.msra.mxu0 0.0
    %282 = vmatpush.xpose.msra.mxu0 0.0
    %283 = vmatpush.xpose.msra.mxu0 0.0
    %284 = vmatpush.xpose.msra.mxu0 0.0
    %285 = vmatpush.xpose.msra.mxu0 0.0
    %286 = vmatpush.xpose.msra.mxu0 0.0
    %287 = vmatpush.xpose.msra.mxu0 0.0
    %288 = vmatpush.xpose.msra.mxu0 0.0
    %289 = vmatpush.xpose.msra.mxu0 %v279
    %290 = vmatpush.xpose.msra.mxu0 %v277
    %291 = vmatpush.xpose.msra.mxu0 %v275
    %292 = vmatpush.xpose.msra.mxu0 %v273
    %293 = vmatpush.xpose.msra.mxu0 %v271
    %294 = vmatpush.xpose.msra.mxu0 %v269
    %295 = vmatpush.xpose.msra.mxu0 %v267
    %296 = vmatpush.xpose.msra.mxu0 %v265
    %297 = vmatmul.f32.gmra.mxu0 %v260
    %v298 = vpop.f32.mrf.mxu0
    %v299 = vadd.f32 %v70, %v298
    %300 = vmatmul.f32.gmra.mxu0 %v263
    %v301 = vpop.f32.mrf.mxu0
    %v302 = vadd.f32 %v71, %v301
    %303 = vdwg.mxu0
    %vm304 = vcmask 523264
    %v305 = vsel %vm304, %v299, -inf
    %306 = vmax.xlane.f32.xlu0 %v305
    %v307 = vpop.xlane.xlu0 %306
    %v308 = vsel %vm304, %v302, -inf
    %309 = vmax.xlane.f32.xlu0 %v308
    %v310 = vpop.xlane.xlu0 %309
    %v311 = vsub.f32 %v299, %v307
    %v312 = vsub.f32 %v302, %v310
    %v313 = vmul.f32 %v311, 1.442695
    %v314 = vpow.pop %v313
    %v315 = vmul.f32 %v312, 1.442695
    %v316 = vpow.pop %v315
    %v318 = vsel %vm304, %v314, 0
    %v321 = vsel %vm304, %v316, 0
    %323 = vmatpush.msra.mxu0 0.0
    %324 = vmatpush.msra.mxu0 0.0
    %325 = vmatpush.msra.mxu0 0.0
    %326 = vmatpush.msra.mxu0 0.0
    %327 = vmatpush.msra.mxu0 0.0
    %328 = vmatpush.msra.mxu0 0.0
    %329 = vmatpush.msra.mxu0 0.0
    %330 = vmatpush.msra.mxu0 0.0
    %331 = vmatpush.msra.mxu0 %v69
    %332 = vmatpush.msra.mxu0 %v68
    %333 = vmatpush.msra.mxu0 %v67
    %334 = vmatpush.msra.mxu0 %v66
    %335 = vmatpush.msra.mxu0 %v65
    %336 = vmatpush.msra.mxu0 %v64
    %337 = vmatpush.msra.mxu0 %v63
    %338 = vmatpush.msra.mxu0 %v62
    %339 = vmatmul.f32.gmra.mxu0 %v318
    %v340 = vpop.f32.mrf.mxu0
    %v341 = vadd.f32 %v72, %v340
    %342 = vmatmul.f32.gmra.mxu0 %v321
    %v343 = vpop.f32.mrf.mxu0
    %v344 = vadd.f32 %v73, %v343
    %345 = vdwg.mxu0
    %v346 = vrcp.pop %v341
    %v347 = vmul.f32 %v341, %v346
    %v348 = vsub.f32 1.0, %v347
    %v349 = vmul.f32 %v346, %v348
    %v350 = vadd.f32 %v346, %v349
    %vm351 = vweird.f32 %v341
    %vm352 = vweird.f32 %v346
    %vm353 = vmor %vm351, %vm352
    %v354 = vsel %vm353, %v346, %v350
    %v355 = vand.u32 2147483647, %v341
    %vm356 = vcmp.eq.f32.partialorder %v355, 8.507059e+37
    %v357 = vand.u32 %v341, 2147483648
    %v358 = vor.u32 1.1754944e-38, %v357
    %v359 = vsel %vm356, %v358, %v354
    %v360 = vmul.f32 %v314, %v359
    %v361 = vrcp.pop %v344
    %v362 = vmul.f32 %v344, %v361
    %v363 = vsub.f32 1.0, %v362
    %v364 = vmul.f32 %v361, %v363
    %v365 = vadd.f32 %v361, %v364
    %vm366 = vweird.f32 %v344
    %vm367 = vweird.f32 %v361
    %vm368 = vmor %vm366, %vm367
    %v369 = vsel %vm368, %v361, %v365
    %v370 = vand.u32 2147483647, %v344
    %vm371 = vcmp.eq.f32.partialorder %v370, 8.507059e+37
    %v372 = vand.u32 %v344, 2147483648
    %v373 = vor.u32 1.1754944e-38, %v372
    %v374 = vsel %vm371, %v373, %v369
    %v375 = vmul.f32 %v316, %v374
    %384 = vrot.lane.b32.xlu0 %v227, 64
    %v385 = vpop.permute.xlu0 %384
    %386 = vrot.lane.b32.xlu0 %v228, 64
    %v387 = vpop.permute.xlu0 %386
    %388 = vrot.lane.b32.xlu0 %v229, 64
    %v389 = vpop.permute.xlu0 %388
    %390 = vrot.lane.b32.xlu0 %v230, 64
    %v391 = vpop.permute.xlu0 %390
    %392 = vrot.lane.b32.xlu0 %v231, 64
    %v393 = vpop.permute.xlu0 %392
    %394 = vrot.lane.b32.xlu0 %v232, 64
    %v395 = vpop.permute.xlu0 %394
    %396 = vrot.lane.b32.xlu0 %v233, 64
    %v397 = vpop.permute.xlu0 %396
    %398 = vrot.lane.b32.xlu0 %v234, 64
    %v399 = vpop.permute.xlu0 %398
    %v409 = vsel %vm304, %v360, 0
    %v412 = vsel %vm304, %v375, 0
    %414 = vmatpush.msra.mxu0 0.0
    %415 = vmatpush.msra.mxu0 0.0
    %416 = vmatpush.msra.mxu0 0.0
    %417 = vmatpush.msra.mxu0 0.0
    %418 = vmatpush.msra.mxu0 0.0
    %419 = vmatpush.msra.mxu0 0.0
    %420 = vmatpush.msra.mxu0 0.0
    %421 = vmatpush.msra.mxu0 0.0
    %422 = vmatpush.msra.mxu0 %v399
    %423 = vmatpush.msra.mxu0 %v397
    %424 = vmatpush.msra.mxu0 %v395
    %425 = vmatpush.msra.mxu0 %v393
    %426 = vmatpush.msra.mxu0 %v391
    %427 = vmatpush.msra.mxu0 %v389
    %428 = vmatpush.msra.mxu0 %v387
    %429 = vmatpush.msra.mxu0 %v385
    %430 = vmatmul.f32.gmra.mxu0 %v409
    %v431 = vpop.f32.mrf.mxu0
    %v432 = vadd.f32 0.0, %v431
    %433 = vmatmul.f32.gmra.mxu0 %v412
    %v434 = vpop.f32.mrf.mxu0
    %v435 = vadd.f32 0.0, %v434
    %436 = vdwg.mxu0
    %v437 = vperm.slane %v49, 0
    %442 = vrot.lane.b32.xlu0 %v23, 32
    %v443 = vpop.permute.xlu0 %442
    %444 = vrot.lane.b32.xlu0 %v24, 32
    %v445 = vpop.permute.xlu0 %444
    %446 = vrot.lane.b32.xlu0 %v25, 32
    %v447 = vpop.permute.xlu0 %446
    %448 = vrot.lane.b32.xlu0 %v26, 32
    %v449 = vpop.permute.xlu0 %448
    %v455 = vsel %vm74, %v432, 0
    %v458 = vsel %vm74, %v435, 0
    %460 = vmatpush.msra.mxu0 0.0
    %461 = vmatpush.msra.mxu0 0.0
    %462 = vmatpush.msra.mxu0 0.0
    %463 = vmatpush.msra.mxu0 0.0
    %464 = vmatpush.msra.mxu0 0.0
    %465 = vmatpush.msra.mxu0 0.0
    %466 = vmatpush.msra.mxu0 0.0
    %467 = vmatpush.msra.mxu0 0.0
    %468 = vmatpush.msra.mxu0 0.0
    %469 = vmatpush.msra.mxu0 0.0
    %470 = vmatpush.msra.mxu0 0.0
    %471 = vmatpush.msra.mxu0 0.0
    %472 = vmatpush.msra.mxu0 %v449
    %473 = vmatpush.msra.mxu0 %v447
    %474 = vmatpush.msra.mxu0 %v445
    %475 = vmatpush.msra.mxu0 %v443
    %476 = vmatmul.f32.gmra.mxu0 %v455
    %v477 = vpop.f32.mrf.mxu0
    %v478 = vadd.f32 %v437, %v477
    %479 = vmatmul.f32.gmra.mxu0 %v458
    %v480 = vpop.f32.mrf.mxu0
    %v481 = vadd.f32 %v437, %v480
    %482 = vdwg.mxu0
    %v483 = vadd.f32 %v21, %v478
    %v484 = vadd.f32 %v22, %v481
    %v485 = vsel %vm74, %v483, 0.0
    %486 = vadd.xlane.f32.xlu0 %v485
    %v487 = vpop.xlane.xlu0 %486
    %v488 = vsel %vm74, %v484, 0.0
    %489 = vadd.xlane.f32.xlu0 %v488
    %v490 = vpop.xlane.xlu0 %489
    %v491 = vmul.f32 %v487, %v87
    %v492 = vmul.f32 %v490, %v87
    %v493 = vsub.f32 %v483, %v491
    %v494 = vsub.f32 %v484, %v492
    %v495 = vmul.f32 %v493, %v493
    %v496 = vmul.f32 %v494, %v494
    %v497 = vsel %vm74, %v495, 0.0
    %498 = vadd.xlane.f32.xlu0 %v497
    %v499 = vpop.xlane.xlu0 %498
    %v500 = vsel %vm74, %v496, 0.0
    %501 = vadd.xlane.f32.xlu0 %v500
    %v502 = vpop.xlane.xlu0 %501
    %v503 = vmul.f32 %v499, %v87
    %v504 = vmul.f32 %v502, %v87
    %v505 = vadd.f32 %v503, 1e-05
    %v506 = vadd.f32 %v504, 1e-05
    %v507 = vrsqrt.pop %v505
    %v508 = vmul.f32 %v507, %v505
    %v509 = vmul.f32 %v508, %v507
    %v510 = vmul.f32 0.5, %v509
    %v511 = vsub.f32 1.5, %v510
    %v512 = vmul.f32 %v507, %v511
    %vm513 = vweird.f32 %v505
    %vm514 = vweird.f32 %v507
    %vm515 = vmor %vm513, %vm514
    %v516 = vsel %vm515, %v507, %v512
    %v517 = vrsqrt.pop %v506
    %v518 = vmul.f32 %v517, %v506
    %v519 = vmul.f32 %v518, %v517
    %v520 = vmul.f32 0.5, %v519
    %v521 = vsub.f32 1.5, %v520
    %v522 = vmul.f32 %v517, %v521
    %vm523 = vweird.f32 %v506
    %vm524 = vweird.f32 %v517
    %vm525 = vmor %vm523, %vm524
    %v526 = vsel %vm525, %v517, %v522
    %v527 = vmul.f32 %v493, %v516
    %v528 = vmul.f32 %v494, %v526
    %v529 = vperm.slane %v50, 0
    %v530 = vmul.f32 %v527, %v529
    %v531 = vmul.f32 %v528, %v529
    %v532 = vperm.slane %v51, 0
    %v533 = vadd.f32 %v530, %v532
    %v534 = vadd.f32 %v531, %v532
    %v535 = vperm.slane %v53, 0
    %v537 = vsel %vm74, %v533, 0
    %v540 = vsel %vm74, %v534, 0
    %542 = vmatpush.msra.mxu0 0.0
    %543 = vmatpush.msra.mxu0 0.0
    %544 = vmatpush.msra.mxu0 0.0
    %545 = vmatpush.msra.mxu0 0.0
    %546 = vmatpush.msra.mxu0 0.0
    %547 = vmatpush.msra.mxu0 0.0
    %548 = vmatpush.msra.mxu0 0.0
    %549 = vmatpush.msra.mxu0 0.0
    %550 = vmatpush.msra.mxu0 0.0
    %551 = vmatpush.msra.mxu0 0.0
    %552 = vmatpush.msra.mxu0 0.0
    %553 = vmatpush.msra.mxu0 0.0
    %554 = vmatpush.msra.mxu0 %v30
    %555 = vmatpush.msra.mxu0 %v29
    %556 = vmatpush.msra.mxu0 %v28
    %557 = vmatpush.msra.mxu0 %v27
    %558 = vmatmul.f32.gmra.mxu0 %v537
    %v559 = vpop.f32.mrf.mxu0
    %v560 = vadd.f32 %v535, %v559
    %561 = vmatmul.f32.gmra.mxu0 %v540
    %v562 = vpop.f32.mrf.mxu0
    %v563 = vadd.f32 %v535, %v562
    %564 = vdwg.mxu0
    %v565 = vmax.f32 %v560, 0.0
    %v566 = vmax.f32 %v563, 0.0
    %v567 = vperm.slane %v52, 0
    %568 = vmatpush.msra.mxu0 %v46
    %569 = vmatpush.msra.mxu0 %v45
    %570 = vmatpush.msra.mxu0 %v44
    %571 = vmatpush.msra.mxu0 %v43
    %572 = vmatpush.msra.mxu0 %v42
    %573 = vmatpush.msra.mxu0 %v41
    %574 = vmatpush.msra.mxu0 %v40
    %575 = vmatpush.msra.mxu0 %v39
    %576 = vmatpush.msra.mxu0 %v38
    %577 = vmatpush.msra.mxu0 %v37
    %578 = vmatpush.msra.mxu0 %v36
    %579 = vmatpush.msra.mxu0 %v35
    %580 = vmatpush.msra.mxu0 %v34
    %581 = vmatpush.msra.mxu0 %v33
    %582 = vmatpush.msra.mxu0 %v32
    %583 = vmatpush.msra.mxu0 %v31
    %584 = vmatmul.f32.gmra.mxu0 %v565
    %v585 = vpop.f32.mrf.mxu0
    %v586 = vadd.f32 %v567, %v585
    %587 = vmatmul.f32.gmra.mxu0 %v566
    %v588 = vpop.f32.mrf.mxu0
    %v589 = vadd.f32 %v567, %v588
    %590 = vdwg.mxu0
    %v591 = vadd.f32 %v483, %v586
    %v592 = vadd.f32 %v484, %v589
    %593 = vst.msk [vmem:[#allocation2] sm:$0xff] %vm74, %v591
    %594 = vst.msk [vmem:[#allocation2 + $0x8] sm:$0xff] %vm74, %v592
    // Predicated region
    $region22: #{tpu_custom_call.1} parent=1 // pred_check
      _
    $region23: #{tpu_custom_call.1} parent=1 // pred_check_branch
      %596 = sbr.rel (0) target = $region25
    $region24: #{tpu_custom_call.1} parent=1 // pred_region
      %598 = vsyncadd [#allocation3], 0
      %s599 = sshll.u32 [#allocation2], 4
      %s600 = int_to_ptr.vmem [resolvable:$true] %s599
      %s601 = sshll.u32 %s5, 4
      %s602 = int_to_ptr.hbm [resolvable:$true] %s601
      %607 = dma.vmem_to_hbm [thread:$0]  %s600, 256, %s602, [#allocation3], 128, 128, 8
    $region25: #{tpu_custom_call.1} parent=1 // pred_fallthru
      _
    // Predicated region
    $region26: #{tpu_custom_call.1} parent=1 // pred_check
      _
    $region27: #{tpu_custom_call.1} parent=1 // pred_check_branch
      %609 = sbr.rel (0) target = $region29
    $region28: #{tpu_custom_call.1} parent=1 // pred_region
      %611 = dma.done [#allocation3], 256
    $region29: #{tpu_custom_call.1} parent=1 // pred_fallthru
      _
    %612 = vsyncpa [#allocation3], 1

</llo_original>
